<compile_context>
chip_gen: v7x
topology: tpu7x:2x2x1
jax: 0.10.0
libtpu: 0.0.40
codegen_flags: <defaults>
</compile_context>

<pallas_src>
import jax
import jax.numpy as jnp
from jax.experimental import pallas as pl
from jax.experimental.pallas import tpu as pltpu

# ---- module hyperparameters (mirroring `args`) ------------------------------
B = 2    # batch
L = 16   # args.train_seq_len
C = 4    # args.conv_out_channels
K = 3    # args.conv_kernel_size
P = 2    # args.max_pool_kernel_size
V = 8    # args.val_seq_len

LC = L - (K - 1)      # conv1d output length (valid conv, stride 1)
LP = LC - (P - 1)     # maxpool output length (module explicitly sets stride=1)
F = C * LP            # flattened feature dim fed to the Linear layer
CB = C * B            # channel-vectorized row count (fills the 8 f32 sublanes)
SEG = 16              # lane stride per flattened channel segment (power of two)
F_PAD = C * SEG       # padded flattened feature dim (64)
PCOLS = 16            # lane width of the packed parameter slab

# packed parameter slab layout, shape (F_PAD + CB, PCOLS), f32:
#   [0:F_PAD,        0:V]       lin_w^T, each channel segment zero-padded LP -> SEG
#   [F_PAD:F_PAD+CB, 0:K]       conv weight table, row c*B + b = conv_w[c]
#   [F_PAD:F_PAD+CB, K:K+1]     conv bias table,   row c*B + b = conv_b[c]
#   [F_PAD:F_PAD+CB, 8:8+V]     lin_b broadcast along rows


def basecnn_kernel(x_ref, p_ref, o_ref):
    # x_ref: (B, L)              VMEM f32  per-call activation (in_channels=1 squeezed)
    # p_ref: (F_PAD+CB, PCOLS)   VMEM f32  packed parameters (layout above)
    # o_ref: (B, V)              VMEM f32
    x = x_ref[...]                                      # (B, L)
    xb = jnp.concatenate([x] * C, axis=0)               # (CB, L), row c*B + b = x[b]

    cw = p_ref[F_PAD:F_PAD + CB, 0:K]                   # (CB, K)  conv weights
    cb = p_ref[F_PAD:F_PAD + CB, K:K + 1]               # (CB, 1)  conv bias

    # valid conv1d for ALL channels at once: K full-vreg VPU multiply-adds.
    conv = xb[:, 0:LC] * cw[:, 0:1]
    for k in range(1, K):
        conv = conv + xb[:, k:k + LC] * cw[:, k:k + 1]
    conv = conv + cb                                    # (CB, LC)

    # maxpool1d(kernel=P, stride=1), channel-vectorized.
    pooled = conv[:, 0:LP]
    for p in range(1, P):
        pooled = jnp.maximum(pooled, conv[:, p:p + LP])  # (CB, LP)

    # flatten(start_dim=1), built in registers with a SEG-lane per-channel stride:
    #   flat[b, c*SEG + l] = pooled[c*B + b, l]  for l < LP, zero otherwise.
    pooled_pad = jnp.concatenate(
        [pooled, jnp.zeros((CB, SEG - LP), jnp.float32)], axis=1)          # (CB, SEG)
    flat = jnp.concatenate(
        [pooled_pad[c * B:(c + 1) * B, :] for c in range(C)], axis=1)      # (B, F_PAD)

    # single MXU contraction against the pre-transposed, segment-padded weight.
    # TODO(synk): on v5e/v6e benchmark a VPU broadcast-mul + cross-lane-reduce against
    #             this (2,64)x(64,8) MXU dot (MRF drain latency); keep MXU on v7x (MRB).
    lwT = p_ref[0:F_PAD, 0:V]                           # (F_PAD, V)
    out = jax.lax.dot_general(
        flat, lwT, dimension_numbers=(((1,), (0,)), ((), ())),
        preferred_element_type=jnp.float32)
    lb = p_ref[F_PAD:F_PAD + B, 8:8 + V]                # (B, V)  lin_b (row-broadcast)
    o_ref[...] = out + lb                               # (B, V)
    # TODO(synk): if B/V ever scale, write a lane-dense (8, 128) output slab instead.


def pack_params(conv_w, conv_b, lin_w, lin_b):
    """One-time parameter packing (runs at init, NOT in the per-call hot path)."""
    cwb = jnp.repeat(conv_w.reshape(C, K).astype(jnp.float32), B, axis=0)    # (CB, K)
    cbb = jnp.repeat(conv_b.reshape(C, 1).astype(jnp.float32), B, axis=0)    # (CB, 1)
    # (V, F) -> (F_PAD, V): transpose + per-channel zero-pad LP -> SEG.
    lwT = lin_w.astype(jnp.float32).reshape(V, C, LP).transpose(1, 2, 0)     # (C, LP, V)
    lwT = jnp.pad(lwT, ((0, 0), (0, SEG - LP), (0, 0))).reshape(F_PAD, V)

    slab = jnp.zeros((F_PAD + CB, PCOLS), jnp.float32)
    slab = slab.at[0:F_PAD, 0:V].set(lwT)
    slab = slab.at[F_PAD:F_PAD + CB, 0:K].set(cwb)
    slab = slab.at[F_PAD:F_PAD + CB, K:K + 1].set(cbb)
    slab = slab.at[F_PAD:F_PAD + CB, 8:8 + V].set(
        jnp.broadcast_to(lin_b.reshape(1, V).astype(jnp.float32), (CB, V)))
    return slab


@jax.jit
def basecnn_forward(x, params):
    # x: (B, 1, L) per-call activation; params: packed slab from pack_params().
    x2 = x.reshape(B, L)   # squeeze in_channels=1 — contiguous no-copy reshape
    return pl.pallas_call(
        basecnn_kernel,
        out_shape=jax.ShapeDtypeStruct((B, V), jnp.float32),
        in_specs=[
            pl.BlockSpec(memory_space=pltpu.MemorySpace.VMEM),   # activation
            pl.BlockSpec(memory_space=pltpu.MemorySpace.VMEM),   # packed parameters
        ],
        out_specs=pl.BlockSpec(memory_space=pltpu.MemorySpace.VMEM),
    )(x2, params)


def ref_forward(x, conv_w, conv_b, lin_w, lin_b):
    # pure-JAX reference mirroring the PyTorch forward (MaxPool1d stride=1)
    conv = jax.lax.conv_general_dilated(
        x, conv_w, window_strides=(1,), padding="VALID",
        dimension_numbers=("NCH", "OIH", "NCH"))
    conv = conv + conv_b[None, :, None]
    pooled = jax.lax.reduce_window(
        conv, -jnp.inf, jax.lax.max, (1, 1, P), (1, 1, 1), "VALID")
    flat = pooled.reshape(B, -1)
    return flat @ lin_w.T + lin_b[None, :]


if __name__ == "__main__":
    key = jax.random.PRNGKey(0)
    k1, k2, k3, k4, k5 = jax.random.split(key, 5)
    x = jax.random.normal(k1, (B, 1, L), jnp.float32)
    conv_w = jax.random.normal(k2, (C, 1, K), jnp.float32) * 0.5
    conv_b = jax.random.normal(k3, (C,), jnp.float32) * 0.1
    lin_w = jax.random.normal(k4, (V, F), jnp.float32) * 0.1
    lin_b = jax.random.normal(k5, (V,), jnp.float32) * 0.1

    params = pack_params(conv_w, conv_b, lin_w, lin_b)   # once, outside the hot path

    out = jax.block_until_ready(basecnn_forward(x, params))
    ref = ref_forward(x, conv_w, conv_b, lin_w, lin_b)
    assert out.shape == (B, V)
    assert jnp.allclose(out, ref, atol=1e-4, rtol=1e-4), "mismatch vs reference"
    print("KERNEL_OK")
</pallas_src>

<mosaic_0001>
module attributes {stable_mosaic.version = 11 : i64} {
  func.func @basecnn_kernel(%arg0: memref<2x16xf32, #tpu.memory_space<vmem>>, %arg1: memref<72x16xf32, #tpu.memory_space<vmem>>, %arg2: memref<2x8xf32, #tpu.memory_space<vmem>>) attributes {dimension_semantics = [], scalar_prefetch = 0 : i64, scratch_operands = 0 : i64, tpu.core_type = #tpu.core_type<tc>} {
    %c0 = arith.constant 0 : index
    %c0_0 = arith.constant 0 : index
    %0 = vector.load %arg0[%c0, %c0_0] : memref<2x16xf32, #tpu.memory_space<vmem>>, vector<2x16xf32>
    %1 = tpu.concatenate %0, %0, %0, %0 in 0 : vector<2x16xf32>, vector<2x16xf32>, vector<2x16xf32>, vector<2x16xf32> -> vector<8x16xf32>
    %c64 = arith.constant 64 : index
    %c0_1 = arith.constant 0 : index
    %2 = vector.load %arg1[%c64, %c0_1] : memref<72x16xf32, #tpu.memory_space<vmem>>, vector<8x3xf32>
    %c64_2 = arith.constant 64 : index
    %c3 = arith.constant 3 : index
    %3 = vector.load %arg1[%c64_2, %c3] : memref<72x16xf32, #tpu.memory_space<vmem>>, vector<8x1xf32>
    %4 = vector.extract_strided_slice %1 {offsets = [0, 0], sizes = [8, 14], strides = [1, 1]} : vector<8x16xf32> to vector<8x14xf32>
    %5 = vector.extract_strided_slice %2 {offsets = [0, 0], sizes = [8, 1], strides = [1, 1]} : vector<8x3xf32> to vector<8x1xf32>
    %6 = vector.broadcast %5 : vector<8x1xf32> to vector<8x14xf32>
    %7 = arith.mulf %4, %6 : vector<8x14xf32>
    %8 = vector.extract_strided_slice %1 {offsets = [0, 1], sizes = [8, 14], strides = [1, 1]} : vector<8x16xf32> to vector<8x14xf32>
    %9 = vector.extract_strided_slice %2 {offsets = [0, 1], sizes = [8, 1], strides = [1, 1]} : vector<8x3xf32> to vector<8x1xf32>
    %10 = vector.broadcast %9 : vector<8x1xf32> to vector<8x14xf32>
    %11 = arith.mulf %8, %10 : vector<8x14xf32>
    %12 = arith.addf %7, %11 : vector<8x14xf32>
    %13 = vector.extract_strided_slice %1 {offsets = [0, 2], sizes = [8, 14], strides = [1, 1]} : vector<8x16xf32> to vector<8x14xf32>
    %14 = vector.extract_strided_slice %2 {offsets = [0, 2], sizes = [8, 1], strides = [1, 1]} : vector<8x3xf32> to vector<8x1xf32>
    %15 = vector.broadcast %14 : vector<8x1xf32> to vector<8x14xf32>
    %16 = arith.mulf %13, %15 : vector<8x14xf32>
    %17 = arith.addf %12, %16 : vector<8x14xf32>
    %18 = vector.broadcast %3 : vector<8x1xf32> to vector<8x14xf32>
    %19 = arith.addf %17, %18 : vector<8x14xf32>
    %20 = vector.extract_strided_slice %19 {offsets = [0, 0], sizes = [8, 13], strides = [1, 1]} : vector<8x14xf32> to vector<8x13xf32>
    %21 = vector.extract_strided_slice %19 {offsets = [0, 1], sizes = [8, 13], strides = [1, 1]} : vector<8x14xf32> to vector<8x13xf32>
    %22 = arith.maximumf %20, %21 : vector<8x13xf32>
    %cst = arith.constant 0.000000e+00 : f32
    %23 = vector.broadcast %cst : f32 to vector<8x3xf32>
    %24 = tpu.concatenate %22, %23 in 1 : vector<8x13xf32>, vector<8x3xf32> -> vector<8x16xf32>
    %25 = vector.extract_strided_slice %24 {offsets = [0, 0], sizes = [2, 16], strides = [1, 1]} : vector<8x16xf32> to vector<2x16xf32>
    %26 = vector.extract_strided_slice %24 {offsets = [2, 0], sizes = [2, 16], strides = [1, 1]} : vector<8x16xf32> to vector<2x16xf32>
    %27 = vector.extract_strided_slice %24 {offsets = [4, 0], sizes = [2, 16], strides = [1, 1]} : vector<8x16xf32> to vector<2x16xf32>
    %28 = vector.extract_strided_slice %24 {offsets = [6, 0], sizes = [2, 16], strides = [1, 1]} : vector<8x16xf32> to vector<2x16xf32>
    %29 = tpu.concatenate %25, %26, %27, %28 in 1 : vector<2x16xf32>, vector<2x16xf32>, vector<2x16xf32>, vector<2x16xf32> -> vector<2x64xf32>
    %c0_3 = arith.constant 0 : index
    %c0_4 = arith.constant 0 : index
    %30 = vector.load %arg1[%c0_3, %c0_4] : memref<72x16xf32, #tpu.memory_space<vmem>>, vector<64x8xf32>
    %cst_5 = arith.constant dense<0.000000e+00> : vector<2x8xf32>
    %31 = tpu.matmul %29, %30, %cst_5 {dimension_numbers = #tpu.dot_dimension_numbers<[1], [0], [0], [1], [0, 0, 1, 1], [], []>} : vector<2x64xf32>, vector<64x8xf32>, vector<2x8xf32> -> vector<2x8xf32>
    %c64_6 = arith.constant 64 : index
    %c8 = arith.constant 8 : index
    %32 = vector.load %arg1[%c64_6, %c8] : memref<72x16xf32, #tpu.memory_space<vmem>>, vector<2x8xf32>
    %33 = arith.addf %31, %32 : vector<2x8xf32>
    %c0_7 = arith.constant 0 : index
    %c0_8 = arith.constant 0 : index
    %34 = vector.load %arg2[%c0_7, %c0_8] : memref<2x8xf32, #tpu.memory_space<vmem>>, vector<2x8xf32>
    tpu.vector_store %arg2[%c0_7, %c0_8], %33 {strides = array<i32>} : memref<2x8xf32, #tpu.memory_space<vmem>>, vector<2x8xf32>,
    return
  }
}

</mosaic_0001>

<llo_original>
// kernel: basecnn_forward.1
$region0: #{basecnn_forward.1}
  #allocation0 [shape = 'u32[]', space=smem, size = 0x4, offset = 0x4, fixed_abs, tag = 'smem constant byte address 0x4 - core index']
  #allocation1 [shape = 'u32[144,128]{1,0:T(1,128)}', space=vmem, size = 0x12000, scoped, tag = 'internal scratch']
  %s0 = inlined_call_operand.vmem [shape: f32[2,16], index: 0, kind: input, shape index: {}]
  %s1 = inlined_call_operand.vmem [shape: f32[72,16], index: 1, kind: input, shape index: {}]
  %s2 = inlined_call_operand.hbm [shape: f32[2,8], index: 2, kind: output, shape index: {}]
  %s3 = sld [smem:[#allocation0]]
  $region18: #{basecnn_forward.1} parent=0
    _
  %s5 = ssub.s32 1, %s3
  %s6 = scalar_select 0, %s5, %s3
  $region1: #{basecnn_forward.1} parent=0
    #allocation2 [shape = 'u8[1024]{0}', space=vmem, size = 0x400, scoped, tag = 'output window, operand 0, single buffered']
    #allocation3 [shape = 's32[1]{0}', space=sflag, size = 0x4, scoped, tag = 'scoped memory for basecnn_forward.1']
    %7 = vsyncpa [#allocation3], 0
    // Predicated region
    $region2: #{basecnn_forward.1} parent=1 // pred_check
      _
    $region3: #{basecnn_forward.1} parent=1 // pred_check_branch
      %9 = sbr.rel (0) target = $region5
    $region4: #{basecnn_forward.1} parent=1 // pred_region
      _
    $region5: #{basecnn_forward.1} parent=1 // pred_fallthru
      _
    // Predicated region
    $region6: #{basecnn_forward.1} parent=1 // pred_check
      _
    $region7: #{basecnn_forward.1} parent=1 // pred_check_branch
      %11 = sbr.rel (0) target = $region9
    $region8: #{basecnn_forward.1} parent=1 // pred_region
      _
    $region9: #{basecnn_forward.1} parent=1 // pred_fallthru
      _
    %v12 = vld [vmem:[%s0] sm:$0x3]
    %v14 = vrot.slane %v12, 6
    %v16 = vrot.slane %v12, 4
    %v18 = vrot.slane %v12, 2
    %vm20 = vcmask 1041408
    %v21 = vsel %vm20, %v12, %v14
    %vm22 = vcmask 1043456
    %v23 = vsel %vm22, %v21, %v16
    %vm24 = vcmask 1045504
    %v25 = vsel %vm24, %v23, %v18
    %v26 = vld [vmem:[%s1 + $0x40] sm:$0xff]
    %28 = vset.pattern.permute.xlu0 0
    %29 = vperm.xlu0 %28, %v26
    %v30 = vpop.permute.xlu0 %29
    %v32 = vmul.f32 %v25, %v30
    %33 = vset.pattern.permute.xlu0 1
    %34 = vperm.xlu0 %33, %v26
    %v35 = vpop.permute.xlu0 %34
    %v37 = vmul.f32 %v25, %v35
    %39 = vrot.lane.b32.xlu0 %v37, 127
    %v40 = vpop.permute.xlu0 %39
    %v42 = vadd.f32 %v32, %v40
    %43 = vset.pattern.permute.xlu0 2
    %44 = vperm.xlu0 %43, %v26
    %v45 = vpop.permute.xlu0 %44
    %v47 = vmul.f32 %v25, %v45
    %49 = vrot.lane.b32.xlu0 %v47, 126
    %v50 = vpop.permute.xlu0 %49
    %v52 = vadd.f32 %v42, %v50
    %53 = vset.pattern.permute.xlu0 3
    %54 = vperm.xlu0 %53, %v26
    %v55 = vpop.permute.xlu0 %54
    %v57 = vadd.f32 %v52, %v55
    %59 = vrot.lane.b32.xlu0 %v57, 127
    %v60 = vpop.permute.xlu0 %59
    %v62 = vmax.f32 %v57, %v60
    %vm63 = vcmask 105472
    %v64 = vsel %vm63, %v62, 0.0
    %v66 = vrot.slane %v64, 2
    %67 = vrot.lane.b32.xlu0 %v66, 16
    %v68 = vpop.permute.xlu0 %67
    %v70 = vrot.slane %v64, 4
    %71 = vrot.lane.b32.xlu0 %v70, 32
    %v72 = vpop.permute.xlu0 %71
    %v74 = vrot.slane %v64, 6
    %75 = vrot.lane.b32.xlu0 %v74, 48
    %v76 = vpop.permute.xlu0 %75
    %vm78 = vcmask 130048
    %v79 = vsel %vm78, %v64, %v68
    %vm80 = vcmask 261120
    %v81 = vsel %vm80, %v79, %v72
    %vm82 = vcmask 392192
    %v83 = vsel %vm82, %v81, %v76
    %v84 = vld [vmem:[%s1] sm:$0xff]
    %v85 = vld [vmem:[%s1 + $0x8] sm:$0xff]
    %v86 = vld [vmem:[%s1 + $0x10] sm:$0xff]
    %v87 = vld [vmem:[%s1 + $0x18] sm:$0xff]
    %v88 = vld [vmem:[%s1 + $0x20] sm:$0xff]
    %v89 = vld [vmem:[%s1 + $0x28] sm:$0xff]
    %v90 = vld [vmem:[%s1 + $0x30] sm:$0xff]
    %v91 = vld [vmem:[%s1 + $0x38] sm:$0xff]
    %v92 = vld [vmem:[%s1 + $0x40] sm:$0x3]
    %94 = vrot.lane.b32.xlu0 %v92, 120
    %v95 = vpop.permute.xlu0 %94
    %vm97 = vcmask 523264
    %v99 = vsel %vm97, %v83, 0
    %101 = vmatprep.subr.mxu0 0.0
    %102 = vmatpush1.msra.mxu0 %v84
    %103 = vmatprep.subr.mxu0 0.0
    %104 = vmatpush1.msra.mxu0 %v85
    %105 = vmatprep.subr.mxu0 0.0
    %106 = vmatpush1.msra.mxu0 %v86
    %107 = vmatprep.subr.mxu0 0.0
    %108 = vmatpush1.msra.mxu0 %v87
    %109 = vmatprep.subr.mxu0 0.0
    %110 = vmatpush1.msra.mxu0 %v88
    %111 = vmatprep.subr.mxu0 0.0
    %112 = vmatpush1.msra.mxu0 %v89
    %113 = vmatprep.subr.mxu0 0.0
    %114 = vmatpush1.msra.mxu0 %v90
    %115 = vmatprep.subr.mxu0 0.0
    %116 = vmatpush1.msra.mxu0 %v91
    %117 = vmatprep.subr.mxu0 0.0
    %118 = vmatpush1.msra.mxu0 0.0
    %119 = vmatprep.subr.mxu0 0.0
    %120 = vmatpush1.msra.mxu0 0.0
    %121 = vmatprep.subr.mxu0 0.0
    %122 = vmatpush1.msra.mxu0 0.0
    %123 = vmatprep.subr.mxu0 0.0
    %124 = vmatpush1.msra.mxu0 0.0
    %125 = vmatprep.subr.mxu0 0.0
    %126 = vmatpush1.msra.mxu0 0.0
    %127 = vmatprep.subr.mxu0 0.0
    %128 = vmatpush1.msra.mxu0 0.0
    %129 = vmatprep.subr.mxu0 0.0
    %130 = vmatpush1.msra.mxu0 0.0
    %131 = vmatprep.subr.mxu0 0.0
    %132 = vmatpush1.msra.mxu0 0.0
    %133 = vmatprep.subr.mxu0 0.0
    %134 = vmatpush1.msra.mxu0 0.0
    %135 = vmatprep.subr.mxu0 0.0
    %136 = vmatpush1.msra.mxu0 0.0
    %137 = vmatprep.subr.mxu0 0.0
    %138 = vmatpush1.msra.mxu0 0.0
    %139 = vmatprep.subr.mxu0 0.0
    %140 = vmatpush1.msra.mxu0 0.0
    %141 = vmatprep.subr.mxu0 0.0
    %142 = vmatpush1.msra.mxu0 0.0
    %143 = vmatprep.subr.mxu0 0.0
    %144 = vmatpush1.msra.mxu0 0.0
    %145 = vmatprep.subr.mxu0 0.0
    %146 = vmatpush1.msra.mxu0 0.0
    %147 = vmatprep.subr.mxu0 0.0
    %148 = vmatpush1.msra.mxu0 0.0
    %149 = vmatprep.subr.mxu0 0.0
    %150 = vmatpush1.msra.mxu0 0.0
    %151 = vmatprep.subr.mxu0 0.0
    %152 = vmatpush1.msra.mxu0 0.0
    %153 = vmatprep.subr.mxu0 0.0
    %154 = vmatpush1.msra.mxu0 0.0
    %155 = vmatprep.subr.mxu0 0.0
    %156 = vmatpush1.msra.mxu0 0.0
    %157 = vmatprep.subr.mxu0 0.0
    %158 = vmatpush1.msra.mxu0 0.0
    %159 = vmatprep.subr.mxu0 0.0
    %160 = vmatpush1.msra.mxu0 0.0
    %161 = vmatprep.subr.mxu0 0.0
    %162 = vmatpush1.msra.mxu0 0.0
    %163 = vmatprep.subr.mxu0 0.0
    %164 = vmatpush1.msra.mxu0 0.0
    %165 = vmatprep.mubr.f32.mxu0 0.0
    %166 = vmatmul.mubr.f32.gmra.mrb[0].mxu0 %v99
    %v167 = vpop.f32.mrb[0].mxu0
    %v168 = vadd.f32 %v95, %v167
    %v169 = vpop.f32.mrb[0].mxu0
    %170 = vdwg.mxu0
    %vm171 = vcmask 58368
    %172 = vst.msk [vmem:[#allocation2] sm:$0x3] %vm171, %v168
    // Predicated region
    $region10: #{basecnn_forward.1} parent=1 // pred_check
      _
    $region11: #{basecnn_forward.1} parent=1 // pred_check_branch
      %174 = sbr.rel (0) target = $region13
    $region12: #{basecnn_forward.1} parent=1 // pred_region
      %s176 = ssub.s32 32, 32
      %177 = vsyncadd [#allocation3], %s176
      %s179 = sshll.u32 [#allocation2], 4
      %s180 = int_to_ptr.vmem [resolvable:$true] %s179
      %182 = dma.vmem_to_hbm [thread:$0]  %s180, 32, %s2, [#allocation3]
    $region13: #{basecnn_forward.1} parent=1 // pred_fallthru
      _
    // Predicated region
    $region14: #{basecnn_forward.1} parent=1 // pred_check
      _
    $region15: #{basecnn_forward.1} parent=1 // pred_check_branch
      %184 = sbr.rel (0) target = $region17
    $region16: #{basecnn_forward.1} parent=1 // pred_region
      %185 = dma.done [#allocation3], 32
    $region17: #{basecnn_forward.1} parent=1 // pred_fallthru
      _
    %186 = vsyncpa [#allocation3], 1

</llo_original>
